<compile_context>
chip_gen: v7x
topology: tpu7x:2x2x1
jax: 0.10.0
libtpu: 0.0.40
codegen_flags: <defaults>
</compile_context>

<pallas_src>
import functools

import jax
import jax.numpy as jnp
from jax.experimental import pallas as pl
from jax.experimental.pallas import tpu as pltpu

LANES = 128
SUBLANES = 8
ACC_ROWS = 32                    # independent accumulator rows (breaks the vadd dep chain)
TARGET_BLOCK_BYTES = 4 << 20     # per-input, per-pipeline-buffer DMA footprint target
MAX_SPLITS = 2                   # leading "parallel" grid axis (2 TensorCores on v7x)
VMEM_LIMIT_FLOOR = 32 << 20
VMEM_LIMIT_CAP = 48 << 20        # stay well under v7x's 64 MiB physical VMEM


def _round_up(a, b):
    return (a + b - 1) // b * b


def _charbonnier_kernel(x_ref, y_ref, out_ref, acc_ref, *,
                        eps, steps, total_blocks, full_blocks,
                        row_tile, rows_in_last, acc_rows):
    p = pl.program_id(0)          # parallel split (sharded across TCs where available)
    i = pl.program_id(1)          # sequential block index within the split

    @pl.when(i == 0)
    def _():
        acc_ref[...] = jnp.zeros_like(acc_ref)

    # Small block-count integers only (no global element indices -> no i32 overflow).
    logical_block = p * steps + i

    d = x_ref[...].astype(jnp.float32) - y_ref[...].astype(jnp.float32)
    v = jnp.sqrt(d * d + jnp.float32(eps))
    cols = v.shape[-1]

    # Fully-valid blocks: unmasked, VPU-only reduction into `acc_rows` independent
    # accumulator rows (sum over the major axis of a sublane-split reshape).
    @pl.when(logical_block < full_blocks)
    def _():
        acc_ref[...] += v.reshape(row_tile // acc_rows, acc_rows, cols).sum(axis=0)

    # The single ragged tail block (this branch is only compiled when it exists):
    # mask rows beyond the logical row count with a block-local iota / static bound.
    if rows_in_last < row_tile:
        @pl.when(logical_block == total_blocks - 1)
        def _():
            row_idx = jax.lax.broadcasted_iota(jnp.int32, v.shape, 0)
            vm = jnp.where(row_idx < rows_in_last, v, jnp.float32(0.0))
            acc_ref[...] += vm.reshape(row_tile // acc_rows, acc_rows, cols).sum(axis=0)

    # Grid steps with logical_block >= total_blocks (overhang of the 2-way split; the
    # index_map clamps their DMA to the last block) fall through both branches and
    # contribute nothing.

    @pl.when(i == steps - 1)
    def _():
        out_ref[0, 0] = jnp.sum(acc_ref[...])


def charbonnier_loss(x, y, eps=1e-6, *, max_block_bytes=TARGET_BLOCK_BYTES):
    """Charbonnier loss: sum(sqrt((x - y)**2 + eps)).  Matches the PyTorch module."""
    assert x.shape == y.shape, (x.shape, y.shape)
    n = x.size
    if n == 0:
        return jnp.float32(0.0)

    # Collapse *leading* dims only: the trailing (lane) dim of the tiled HBM layout is
    # untouched, so this reshape is layout-free (no pad / relayout copy in the wrapper).
    if x.ndim >= 2:
        rows_l, cols = n // x.shape[-1], x.shape[-1]
    else:
        rows_l, cols = 1, max(n, 1)
    x2 = jnp.reshape(x, (rows_l, cols))
    y2 = jnp.reshape(y, (rows_l, cols))

    itemsize = max(x2.dtype.itemsize, y2.dtype.itemsize)
    padded_cols = _round_up(cols, LANES)            # lane padding of the tiled layout

    # Row tile: largest multiple of 8 whose (row_tile, padded_cols) DMA footprint stays
    # within max_block_bytes per input per pipeline buffer.
    if rows_l <= SUBLANES:
        row_tile = rows_l                           # block == full dim (always legal)
    else:
        tgt = max(SUBLANES,
                  (max_block_bytes // (padded_cols * itemsize)) // SUBLANES * SUBLANES)
        row_tile = min(tgt, _round_up(rows_l, SUBLANES))

    acc_rows = (ACC_ROWS if row_tile % ACC_ROWS == 0
                else (SUBLANES if row_tile % SUBLANES == 0 else row_tile))

    block_bytes = row_tile * padded_cols * itemsize
    needed_vmem = 2 * 2 * block_bytes + acc_rows * padded_cols * 4 + (1 << 20)
    if needed_vmem > VMEM_LIMIT_CAP:
        # TODO(synk): pathologically wide trailing dim (a single 8-row block would not
        # fit VMEM with this row-tiled scheme); fall back to plain XLA for that case.
        d = x.astype(jnp.float32) - y.astype(jnp.float32)
        return jnp.sum(jnp.sqrt(d * d + jnp.float32(eps)))

    total_blocks = pl.cdiv(rows_l, row_tile)
    rows_in_last = rows_l - (total_blocks - 1) * row_tile
    full_blocks = total_blocks if rows_in_last == row_tile else total_blocks - 1

    splits = MAX_SPLITS if total_blocks >= MAX_SPLITS else 1
    steps = pl.cdiv(total_blocks, splits)

    def in_map(p, i):
        # Overhanging steps (splits * steps > total_blocks) clamp to the last block;
        # their contribution is skipped in-kernel.
        return (jnp.minimum(p * steps + i, total_blocks - 1), 0)

    kernel = functools.partial(
        _charbonnier_kernel,
        eps=float(eps), steps=steps, total_blocks=total_blocks,
        full_blocks=full_blocks, row_tile=row_tile,
        rows_in_last=rows_in_last, acc_rows=acc_rows)

    bytes_accessed = rows_l * padded_cols * (x2.dtype.itemsize + y2.dtype.itemsize) + splits * 4
    cost = pl.CostEstimate(flops=4 * n, transcendentals=n,
                           bytes_accessed=int(bytes_accessed))

    partials = pl.pallas_call(
        kernel,
        out_shape=jax.ShapeDtypeStruct((splits, 1), jnp.float32),
        grid_spec=pltpu.PrefetchScalarGridSpec(
            num_scalar_prefetch=0,
            grid=(splits, steps),
            in_specs=[
                pl.BlockSpec((row_tile, cols), in_map),
                pl.BlockSpec((row_tile, cols), in_map),
            ],
            out_specs=pl.BlockSpec((1, 1), lambda p, i: (p, 0),
                                   memory_space=pltpu.SMEM),
            scratch_shapes=[pltpu.VMEM((acc_rows, cols), jnp.float32)],
        ),
        compiler_params=pltpu.CompilerParams(
            dimension_semantics=("parallel", "arbitrary"),
            vmem_limit_bytes=int(max(VMEM_LIMIT_FLOOR, needed_vmem)),
        ),
        cost_estimate=cost,
    )(x2, y2)

    return jnp.sum(partials)


if __name__ == "__main__":
    key = jax.random.PRNGKey(0)
    k = jax.random.split(key, 8)

    def ref_loss(x, y, eps=1e-6):
        d = x.astype(jnp.float32) - y.astype(jnp.float32)
        return jnp.sum(jnp.sqrt(d * d + jnp.float32(eps)))

    # 1) Typical small NCHW batch (single block, no masking).
    x1 = jax.random.normal(k[0], (2, 4, 16, 16), dtype=jnp.float32)
    y1 = jax.random.normal(k[1], (2, 4, 16, 16), dtype=jnp.float32)
    out1 = charbonnier_loss(x1, y1)
    jax.block_until_ready(out1)
    assert jnp.allclose(out1, ref_loss(x1, y1), rtol=1e-5, atol=1e-3), (out1, ref_loss(x1, y1))

    # 2) Odd dims (ragged row count -> in-kernel tail mask, single block).
    x2 = jax.random.normal(k[2], (3, 5, 7, 11), dtype=jnp.float32)
    y2 = jax.random.normal(k[3], (3, 5, 7, 11), dtype=jnp.float32)
    out2 = charbonnier_loss(x2, y2)
    jax.block_until_ready(out2)
    assert jnp.allclose(out2, ref_loss(x2, y2), rtol=1e-5, atol=1e-3), (out2, ref_loss(x2, y2))

    # 3) Multi-block + 2-way split + ragged tail block + overhanging grid step
    #    (a small max_block_bytes forces many blocks at a small test shape).
    x3 = jax.random.normal(k[4], (2, 8, 100, 160), dtype=jnp.float32)
    y3 = jax.random.normal(k[5], (2, 8, 100, 160), dtype=jnp.float32)
    out3 = charbonnier_loss(x3, y3, max_block_bytes=256 * 1024)
    jax.block_until_ready(out3)
    assert jnp.allclose(out3, ref_loss(x3, y3), rtol=1e-4, atol=1e-1), (out3, ref_loss(x3, y3))

    # 4) bf16 inputs (raw-dtype DMA, in-kernel upcast).
    x4 = jax.random.normal(k[6], (2, 4, 32, 32), dtype=jnp.float32).astype(jnp.bfloat16)
    y4 = jax.random.normal(k[7], (2, 4, 32, 32), dtype=jnp.float32).astype(jnp.bfloat16)
    out4 = charbonnier_loss(x4, y4)
    jax.block_until_ready(out4)
    assert jnp.allclose(out4, ref_loss(x4, y4), rtol=1e-3, atol=1e-1), (out4, ref_loss(x4, y4))

    print("KERNEL_OK")
</pallas_src>

<mosaic_0001>
module attributes {stable_mosaic.version = 11 : i64} {
  func.func @_charbonnier_kernel(%arg0: i32, %arg1: i32, %arg2: memref<128x16xf32, #tpu.memory_space<vmem>>, %arg3: memref<128x16xf32, #tpu.memory_space<vmem>>, %arg4: memref<1x1xf32, #tpu.memory_space<smem>>, %arg5: memref<32x16xf32, #tpu.memory_space<vmem>>) attributes {dimension_semantics = [#tpu.dimension_semantics<parallel>, #tpu.dimension_semantics<arbitrary>], iteration_bounds = array<i64: 1, 1>, scalar_prefetch = 0 : i64, scratch_operands = 1 : i64, tpu.core_type = #tpu.core_type<tc>, window_params = [{transform_indices = @transform_0, window_bounds = array<i64: 128, 16>}, {transform_indices = @transform_1, window_bounds = array<i64: 128, 16>}, {transform_indices = @transform_2, window_bounds = array<i64: 1, 1>}]} {
    %c0_i32 = arith.constant 0 : i32
    %0 = arith.cmpi eq, %arg1, %c0_i32 : i32
    %1 = arith.extui %0 : i1 to i32
    %c0_i32_0 = arith.constant 0 : i32
    %2 = arith.cmpi ne, %1, %c0_i32_0 : i32
    scf.if %2 {
      %cst_8 = arith.constant 0.000000e+00 : f32
      %18 = vector.broadcast %cst_8 : f32 to vector<32x16xf32>
      %c0_9 = arith.constant 0 : index
      %c0_10 = arith.constant 0 : index
      %19 = vector.load %arg5[%c0_9, %c0_10] : memref<32x16xf32, #tpu.memory_space<vmem>>, vector<32x16xf32>
      tpu.vector_store %arg5[%c0_9, %c0_10], %18 {strides = array<i32>} : memref<32x16xf32, #tpu.memory_space<vmem>>, vector<32x16xf32>,
    } else {
    }
    %c1_i32 = arith.constant 1 : i32
    %3 = arith.muli %arg0, %c1_i32 : i32
    %4 = arith.addi %3, %arg1 : i32
    %c0 = arith.constant 0 : index
    %c0_1 = arith.constant 0 : index
    %5 = vector.load %arg2[%c0, %c0_1] : memref<128x16xf32, #tpu.memory_space<vmem>>, vector<128x16xf32>
    %c0_2 = arith.constant 0 : index
    %c0_3 = arith.constant 0 : index
    %6 = vector.load %arg3[%c0_2, %c0_3] : memref<128x16xf32, #tpu.memory_space<vmem>>, vector<128x16xf32>
    %7 = arith.subf %5, %6 : vector<128x16xf32>
    %8 = arith.mulf %7, %7 : vector<128x16xf32>
    %cst = arith.constant 9.99999997E-7 : f32
    %9 = vector.broadcast %cst : f32 to vector<128x16xf32>
    %10 = arith.addf %8, %9 : vector<128x16xf32>
    %11 = math.sqrt %10 : vector<128x16xf32>
    %c1_i32_4 = arith.constant 1 : i32
    %12 = arith.cmpi slt, %4, %c1_i32_4 : i32
    %13 = arith.extui %12 : i1 to i32
    %c0_i32_5 = arith.constant 0 : i32
    %14 = arith.cmpi ne, %13, %c0_i32_5 : i32
    scf.if %14 {
      %c0_8 = arith.constant 0 : index
      %c0_9 = arith.constant 0 : index
      %18 = vector.load %arg5[%c0_8, %c0_9] : memref<32x16xf32, #tpu.memory_space<vmem>>, vector<32x16xf32>
      %19 = vector.shape_cast %11 : vector<128x16xf32> to vector<4x32x16xf32>
      %cst_10 = arith.constant dense<0.000000e+00> : vector<32x16xf32>
      %20 = vector.multi_reduction <add>, %19, %cst_10 [0] : vector<4x32x16xf32> to vector<32x16xf32>
      %21 = arith.addf %18, %20 : vector<32x16xf32>
      %c0_11 = arith.constant 0 : index
      %c0_12 = arith.constant 0 : index
      %22 = vector.load %arg5[%c0_11, %c0_12] : memref<32x16xf32, #tpu.memory_space<vmem>>, vector<32x16xf32>
      tpu.vector_store %arg5[%c0_11, %c0_12], %21 {strides = array<i32>} : memref<32x16xf32, #tpu.memory_space<vmem>>, vector<32x16xf32>,
    } else {
    }
    %c0_i32_6 = arith.constant 0 : i32
    %15 = arith.cmpi eq, %arg1, %c0_i32_6 : i32
    %16 = arith.extui %15 : i1 to i32
    %c0_i32_7 = arith.constant 0 : i32
    %17 = arith.cmpi ne, %16, %c0_i32_7 : i32
    scf.if %17 {
      %c0_8 = arith.constant 0 : index
      %c0_9 = arith.constant 0 : index
      %18 = vector.load %arg5[%c0_8, %c0_9] : memref<32x16xf32, #tpu.memory_space<vmem>>, vector<32x16xf32>
      %19 = vector.shape_cast %18 : vector<32x16xf32> to vector<1x32x16xf32>
      %cst_10 = arith.constant dense<0.000000e+00> : vector<1xf32>
      %20 = vector.multi_reduction <add>, %19, %cst_10 [1, 2] : vector<1x32x16xf32> to vector<1xf32>
      %21 = vector.shape_cast %20 : vector<1xf32> to vector<1x1x1xf32>
      %22 = vector.extract %21[0, 0, 0] : f32 from vector<1x1x1xf32>
      %c0_11 = arith.constant 0 : index
      %c0_12 = arith.constant 0 : index
      %23 = memref.load %arg4[%c0_11, %c0_12] : memref<1x1xf32, #tpu.memory_space<smem>>
      memref.store %22, %arg4[%c0_11, %c0_12] : memref<1x1xf32, #tpu.memory_space<smem>>
    } else {
    }
    return
  }
  func.func @transform_0(%arg0: i32, %arg1: i32) -> (i32, i32) {
    %c1_i32 = arith.constant 1 : i32
    %0 = arith.muli %arg0, %c1_i32 : i32
    %1 = arith.addi %0, %arg1 : i32
    %c0_i32 = arith.constant 0 : i32
    %2 = arith.minsi %1, %c0_i32 : i32
    %c0_i32_0 = arith.constant 0 : i32
    %c0_i32_1 = arith.constant 0 : i32
    return %2, %c0_i32_0 : i32, i32
  }
  func.func @transform_1(%arg0: i32, %arg1: i32) -> (i32, i32) {
    %c1_i32 = arith.constant 1 : i32
    %0 = arith.muli %arg0, %c1_i32 : i32
    %1 = arith.addi %0, %arg1 : i32
    %c0_i32 = arith.constant 0 : i32
    %2 = arith.minsi %1, %c0_i32 : i32
    %c0_i32_0 = arith.constant 0 : i32
    %c0_i32_1 = arith.constant 0 : i32
    return %2, %c0_i32_0 : i32, i32
  }
  func.func @transform_2(%arg0: i32, %arg1: i32) -> (i32, i32) {
    %c0_i32 = arith.constant 0 : i32
    %c0_i32_0 = arith.constant 0 : i32
    return %arg0, %c0_i32 : i32, i32
  }
}

</mosaic_0001>

<llo_original>
// kernel: tpu_custom_call.1
$region0: #{tpu_custom_call.1}
  #allocation0 [shape = 'u32[]', space=smem, size = 0x4, offset = 0x4, fixed_abs, tag = 'smem constant byte address 0x4 - core index']
  #allocation1 [shape = 'u32[144,128]{1,0:T(1,128)}', space=vmem, size = 0x12000, scoped, tag = 'internal scratch']
  #allocation2 [shape = 'f32[32,16]{1,0:T(8,128)}', space=vmem, size = 0x4000, scoped, tag = 'scratch operand']
  %s0 = inlined_call_operand.vmem [shape: f32[128,16], index: 0, kind: input, shape index: {}]
  %s1 = inlined_call_operand.vmem [shape: f32[128,16], index: 1, kind: input, shape index: {}]
  %s2 = inlined_call_operand.hbm [shape: f32[1,1], index: 2, kind: output, shape index: {}]
  %s3 = sld [smem:[#allocation0]]
  $region30: #{tpu_custom_call.1} parent=0
    _
  %s5 = ssub.s32 1, %s3
  %s6 = scalar_select 0, %s5, %s3
  $region1: #{tpu_custom_call.1} parent=0
    #allocation3 [shape = 'u8[512]{0}', space=smem, size = 0x200, scoped, tag = 'output window, operand 0, single buffered']
    #allocation4 [shape = 's32[1]{0}', space=sflag, size = 0x4, scoped, tag = 'scoped memory for tpu_custom_call.1']
    %7 = vsyncpa [#allocation4], 0
    // Predicated region
    $region2: #{tpu_custom_call.1} parent=1 // pred_check
      _
    $region3: #{tpu_custom_call.1} parent=1 // pred_check_branch
      %9 = sbr.rel (0) target = $region5
    $region4: #{tpu_custom_call.1} parent=1 // pred_region
      %s10 = sadd.s32 0, 0
      %p11 = scmp.lt.s32.totalorder %s10, 0
      %s12 = scalar_select %p11, %s10, 0
      %s13 = smul.u32 16, %s12
      %p14 = scmp.lt.s32.totalorder %s13, 15
      %s15 = scalar_select %p14, %s13, 15
      %s16 = smul.addr %s15, 8
      %s17 = scalar_lea.vmem %s0, %s16
      %s18 = sadd.s32 0, 0
      %p19 = scmp.lt.s32.totalorder %s18, 0
      %s20 = scalar_select %p19, %s18, 0
      %s21 = smul.u32 16, %s20
    $region5: #{tpu_custom_call.1} parent=1 // pred_fallthru
      _
    // Predicated region
    $region6: #{tpu_custom_call.1} parent=1 // pred_check
      _
    $region7: #{tpu_custom_call.1} parent=1 // pred_check_branch
      %23 = sbr.rel (0) target = $region9
    $region8: #{tpu_custom_call.1} parent=1 // pred_region
      %s24 = sadd.s32 0, 0
      %p25 = scmp.lt.s32.totalorder %s24, 0
      %s26 = scalar_select %p25, %s24, 0
      %s27 = smul.u32 16, %s26
      %p28 = scmp.lt.s32.totalorder %s27, 15
      %s29 = scalar_select %p28, %s27, 15
      %s30 = smul.addr %s29, 8
      %s31 = scalar_lea.vmem %s1, %s30
      %s32 = sadd.s32 0, 0
      %p33 = scmp.lt.s32.totalorder %s32, 0
      %s34 = scalar_select %p33, %s32, 0
      %s35 = smul.u32 16, %s34
    $region9: #{tpu_custom_call.1} parent=1 // pred_fallthru
      _
    %s36 = sadd.s32 0, 0
    %p37 = scmp.lt.s32.totalorder %s36, 0
    %s38 = scalar_select %p37, %s36, 0
    %s39 = smul.u32 16, %s38
    %p40 = scmp.lt.s32.totalorder %s39, 15
    %s41 = scalar_select %p40, %s39, 15
    %s42 = smul.addr %s41, 8
    %s43 = scalar_lea.vmem %s0, %s42
    %s44 = sadd.s32 0, 0
    %p45 = scmp.lt.s32.totalorder %s44, 0
    %s46 = scalar_select %p45, %s44, 0
    %s47 = smul.u32 16, %s46
    %p48 = scmp.lt.s32.totalorder %s47, 15
    %s49 = scalar_select %p48, %s47, 15
    %s50 = smul.addr %s49, 8
    %s51 = scalar_lea.vmem %s1, %s50
    %s52 = sadd.s32 0, 0
    %p53 = scmp.lt.s32.totalorder %s52, 0
    %s54 = scalar_select %p53, %s52, 0
    %s55 = smul.u32 16, %s54
    %p56 = scmp.lt.s32.totalorder %s55, 15
    %s57 = scalar_select %p56, %s55, 15
    %s58 = smul.addr %s57, 8
    %s59 = scalar_lea.vmem %s0, %s58
    %s60 = sadd.s32 0, 0
    %p61 = scmp.lt.s32.totalorder %s60, 0
    %s62 = scalar_select %p61, %s60, 0
    %s63 = smul.u32 16, %s62
    %s64 = sadd.s32 0, 0
    %p65 = scmp.lt.s32.totalorder %s64, 0
    %s66 = scalar_select %p65, %s64, 0
    %s67 = smul.u32 16, %s66
    %p68 = scmp.lt.s32.totalorder %s67, 15
    %s69 = scalar_select %p68, %s67, 15
    %s70 = smul.addr %s69, 8
    %s71 = scalar_lea.vmem %s1, %s70
    %s72 = sadd.s32 0, 0
    %p73 = scmp.lt.s32.totalorder %s72, 0
    %s74 = scalar_select %p73, %s72, 0
    %s75 = smul.u32 16, %s74
    %p76 = scmp.eq.s32.totalorder 0, 0
    // Predicated region
    $region10: #{tpu_custom_call.1} parent=1 // pred_check
      %p77 = pneg %p76
    $region11: #{tpu_custom_call.1} parent=1 // pred_check_branch
      %79 = sbr.rel (%p77) target = $region13
    $region12: #{tpu_custom_call.1} parent=1 // pred_region
      %vm80 = vcmask 130048
      %81 = vst.msk [vmem:[#allocation2] sm:$0xff] %vm80, 0.0
      %82 = vst.msk [vmem:[#allocation2 + $0x8] sm:$0xff] %vm80, 0.0
      %83 = vst.msk [vmem:[#allocation2 + $0x10] sm:$0xff] %vm80, 0.0
      %84 = vst.msk [vmem:[#allocation2 + $0x18] sm:$0xff] %vm80, 0.0
    $region13: #{tpu_custom_call.1} parent=1 // pred_fallthru
      _
    %s85 = sadd.s32 0, 0
    %v86 = vld [vmem:[%s59] sm:$0xff]
    %v87 = vld [vmem:[%s59 + $0x8] sm:$0xff]
    %v88 = vld [vmem:[%s59 + $0x10] sm:$0xff]
    %v89 = vld [vmem:[%s59 + $0x18] sm:$0xff]
    %v90 = vld [vmem:[%s59 + $0x20] sm:$0xff]
    %v91 = vld [vmem:[%s59 + $0x28] sm:$0xff]
    %v92 = vld [vmem:[%s59 + $0x30] sm:$0xff]
    %v93 = vld [vmem:[%s59 + $0x38] sm:$0xff]
    %v94 = vld [vmem:[%s59 + $0x40] sm:$0xff]
    %v95 = vld [vmem:[%s59 + $0x48] sm:$0xff]
    %v96 = vld [vmem:[%s59 + $0x50] sm:$0xff]
    %v97 = vld [vmem:[%s59 + $0x58] sm:$0xff]
    %v98 = vld [vmem:[%s59 + $0x60] sm:$0xff]
    %v99 = vld [vmem:[%s59 + $0x68] sm:$0xff]
    %v100 = vld [vmem:[%s59 + $0x70] sm:$0xff]
    %v101 = vld [vmem:[%s59 + $0x78] sm:$0xff]
    %v102 = vld [vmem:[%s71] sm:$0xff]
    %v103 = vld [vmem:[%s71 + $0x8] sm:$0xff]
    %v104 = vld [vmem:[%s71 + $0x10] sm:$0xff]
    %v105 = vld [vmem:[%s71 + $0x18] sm:$0xff]
    %v106 = vld [vmem:[%s71 + $0x20] sm:$0xff]
    %v107 = vld [vmem:[%s71 + $0x28] sm:$0xff]
    %v108 = vld [vmem:[%s71 + $0x30] sm:$0xff]
    %v109 = vld [vmem:[%s71 + $0x38] sm:$0xff]
    %v110 = vld [vmem:[%s71 + $0x40] sm:$0xff]
    %v111 = vld [vmem:[%s71 + $0x48] sm:$0xff]
    %v112 = vld [vmem:[%s71 + $0x50] sm:$0xff]
    %v113 = vld [vmem:[%s71 + $0x58] sm:$0xff]
    %v114 = vld [vmem:[%s71 + $0x60] sm:$0xff]
    %v115 = vld [vmem:[%s71 + $0x68] sm:$0xff]
    %v116 = vld [vmem:[%s71 + $0x70] sm:$0xff]
    %v117 = vld [vmem:[%s71 + $0x78] sm:$0xff]
    %v118 = vsub.f32 %v86, %v102
    %v119 = vsub.f32 %v87, %v103
    %v120 = vsub.f32 %v88, %v104
    %v121 = vsub.f32 %v89, %v105
    %v122 = vsub.f32 %v90, %v106
    %v123 = vsub.f32 %v91, %v107
    %v124 = vsub.f32 %v92, %v108
    %v125 = vsub.f32 %v93, %v109
    %v126 = vsub.f32 %v94, %v110
    %v127 = vsub.f32 %v95, %v111
    %v128 = vsub.f32 %v96, %v112
    %v129 = vsub.f32 %v97, %v113
    %v130 = vsub.f32 %v98, %v114
    %v131 = vsub.f32 %v99, %v115
    %v132 = vsub.f32 %v100, %v116
    %v133 = vsub.f32 %v101, %v117
    %v134 = vmul.f32 %v118, %v118
    %v135 = vmul.f32 %v119, %v119
    %v136 = vmul.f32 %v120, %v120
    %v137 = vmul.f32 %v121, %v121
    %v138 = vmul.f32 %v122, %v122
    %v139 = vmul.f32 %v123, %v123
    %v140 = vmul.f32 %v124, %v124
    %v141 = vmul.f32 %v125, %v125
    %v142 = vmul.f32 %v126, %v126
    %v143 = vmul.f32 %v127, %v127
    %v144 = vmul.f32 %v128, %v128
    %v145 = vmul.f32 %v129, %v129
    %v146 = vmul.f32 %v130, %v130
    %v147 = vmul.f32 %v131, %v131
    %v148 = vmul.f32 %v132, %v132
    %v149 = vmul.f32 %v133, %v133
    %v150 = vadd.f32 %v134, 1e-06
    %v151 = vadd.f32 %v135, 1e-06
    %v152 = vadd.f32 %v136, 1e-06
    %v153 = vadd.f32 %v137, 1e-06
    %v154 = vadd.f32 %v138, 1e-06
    %v155 = vadd.f32 %v139, 1e-06
    %v156 = vadd.f32 %v140, 1e-06
    %v157 = vadd.f32 %v141, 1e-06
    %v158 = vadd.f32 %v142, 1e-06
    %v159 = vadd.f32 %v143, 1e-06
    %v160 = vadd.f32 %v144, 1e-06
    %v161 = vadd.f32 %v145, 1e-06
    %v162 = vadd.f32 %v146, 1e-06
    %v163 = vadd.f32 %v147, 1e-06
    %v164 = vadd.f32 %v148, 1e-06
    %v165 = vadd.f32 %v149, 1e-06
    %v166 = vrsqrt.pop %v150
    %v167 = vmul.f32 %v150, %v166
    %vm168 = vcmp.eq.f32.partialorder %v150, inf
    %v169 = vsel %vm168, %v150, %v167
    %vm170 = vcmp.eq.f32.partialorder %v150, 0.0
    %v171 = vand.u32 %v150, 2147483648
    %v172 = vsel %vm170, %v171, %v169
    %v173 = vrsqrt.pop %v151
    %v174 = vmul.f32 %v151, %v173
    %vm175 = vcmp.eq.f32.partialorder %v151, inf
    %v176 = vsel %vm175, %v151, %v174
    %vm177 = vcmp.eq.f32.partialorder %v151, 0.0
    %v178 = vand.u32 %v151, 2147483648
    %v179 = vsel %vm177, %v178, %v176
    %v180 = vrsqrt.pop %v152
    %v181 = vmul.f32 %v152, %v180
    %vm182 = vcmp.eq.f32.partialorder %v152, inf
    %v183 = vsel %vm182, %v152, %v181
    %vm184 = vcmp.eq.f32.partialorder %v152, 0.0
    %v185 = vand.u32 %v152, 2147483648
    %v186 = vsel %vm184, %v185, %v183
    %v187 = vrsqrt.pop %v153
    %v188 = vmul.f32 %v153, %v187
    %vm189 = vcmp.eq.f32.partialorder %v153, inf
    %v190 = vsel %vm189, %v153, %v188
    %vm191 = vcmp.eq.f32.partialorder %v153, 0.0
    %v192 = vand.u32 %v153, 2147483648
    %v193 = vsel %vm191, %v192, %v190
    %v194 = vrsqrt.pop %v154
    %v195 = vmul.f32 %v154, %v194
    %vm196 = vcmp.eq.f32.partialorder %v154, inf
    %v197 = vsel %vm196, %v154, %v195
    %vm198 = vcmp.eq.f32.partialorder %v154, 0.0
    %v199 = vand.u32 %v154, 2147483648
    %v200 = vsel %vm198, %v199, %v197
    %v201 = vrsqrt.pop %v155
    %v202 = vmul.f32 %v155, %v201
    %vm203 = vcmp.eq.f32.partialorder %v155, inf
    %v204 = vsel %vm203, %v155, %v202
    %vm205 = vcmp.eq.f32.partialorder %v155, 0.0
    %v206 = vand.u32 %v155, 2147483648
    %v207 = vsel %vm205, %v206, %v204
    %v208 = vrsqrt.pop %v156
    %v209 = vmul.f32 %v156, %v208
    %vm210 = vcmp.eq.f32.partialorder %v156, inf
    %v211 = vsel %vm210, %v156, %v209
    %vm212 = vcmp.eq.f32.partialorder %v156, 0.0
    %v213 = vand.u32 %v156, 2147483648
    %v214 = vsel %vm212, %v213, %v211
    %v215 = vrsqrt.pop %v157
    %v216 = vmul.f32 %v157, %v215
    %vm217 = vcmp.eq.f32.partialorder %v157, inf
    %v218 = vsel %vm217, %v157, %v216
    %vm219 = vcmp.eq.f32.partialorder %v157, 0.0
    %v220 = vand.u32 %v157, 2147483648
    %v221 = vsel %vm219, %v220, %v218
    %v222 = vrsqrt.pop %v158
    %v223 = vmul.f32 %v158, %v222
    %vm224 = vcmp.eq.f32.partialorder %v158, inf
    %v225 = vsel %vm224, %v158, %v223
    %vm226 = vcmp.eq.f32.partialorder %v158, 0.0
    %v227 = vand.u32 %v158, 2147483648
    %v228 = vsel %vm226, %v227, %v225
    %v229 = vrsqrt.pop %v159
    %v230 = vmul.f32 %v159, %v229
    %vm231 = vcmp.eq.f32.partialorder %v159, inf
    %v232 = vsel %vm231, %v159, %v230
    %vm233 = vcmp.eq.f32.partialorder %v159, 0.0
    %v234 = vand.u32 %v159, 2147483648
    %v235 = vsel %vm233, %v234, %v232
    %v236 = vrsqrt.pop %v160
    %v237 = vmul.f32 %v160, %v236
    %vm238 = vcmp.eq.f32.partialorder %v160, inf
    %v239 = vsel %vm238, %v160, %v237
    %vm240 = vcmp.eq.f32.partialorder %v160, 0.0
    %v241 = vand.u32 %v160, 2147483648
    %v242 = vsel %vm240, %v241, %v239
    %v243 = vrsqrt.pop %v161
    %v244 = vmul.f32 %v161, %v243
    %vm245 = vcmp.eq.f32.partialorder %v161, inf
    %v246 = vsel %vm245, %v161, %v244
    %vm247 = vcmp.eq.f32.partialorder %v161, 0.0
    %v248 = vand.u32 %v161, 2147483648
    %v249 = vsel %vm247, %v248, %v246
    %v250 = vrsqrt.pop %v162
    %v251 = vmul.f32 %v162, %v250
    %vm252 = vcmp.eq.f32.partialorder %v162, inf
    %v253 = vsel %vm252, %v162, %v251
    %vm254 = vcmp.eq.f32.partialorder %v162, 0.0
    %v255 = vand.u32 %v162, 2147483648
    %v256 = vsel %vm254, %v255, %v253
    %v257 = vrsqrt.pop %v163
    %v258 = vmul.f32 %v163, %v257
    %vm259 = vcmp.eq.f32.partialorder %v163, inf
    %v260 = vsel %vm259, %v163, %v258
    %vm261 = vcmp.eq.f32.partialorder %v163, 0.0
    %v262 = vand.u32 %v163, 2147483648
    %v263 = vsel %vm261, %v262, %v260
    %v264 = vrsqrt.pop %v164
    %v265 = vmul.f32 %v164, %v264
    %vm266 = vcmp.eq.f32.partialorder %v164, inf
    %v267 = vsel %vm266, %v164, %v265
    %vm268 = vcmp.eq.f32.partialorder %v164, 0.0
    %v269 = vand.u32 %v164, 2147483648
    %v270 = vsel %vm268, %v269, %v267
    %v271 = vrsqrt.pop %v165
    %v272 = vmul.f32 %v165, %v271
    %vm273 = vcmp.eq.f32.partialorder %v165, inf
    %v274 = vsel %vm273, %v165, %v272
    %vm275 = vcmp.eq.f32.partialorder %v165, 0.0
    %v276 = vand.u32 %v165, 2147483648
    %v277 = vsel %vm275, %v276, %v274
    %p278 = scmp.lt.s32.totalorder %s85, 1
    // Predicated region
    $region14: #{tpu_custom_call.1} parent=1 // pred_check
      %p279 = pneg %p278
    $region15: #{tpu_custom_call.1} parent=1 // pred_check_branch
      %281 = sbr.rel (%p279) target = $region17
    $region16: #{tpu_custom_call.1} parent=1 // pred_region
      %v282 = vld [vmem:[#allocation2] sm:$0xff]
      %v283 = vld [vmem:[#allocation2 + $0x8] sm:$0xff]
      %v284 = vld [vmem:[#allocation2 + $0x10] sm:$0xff]
      %v285 = vld [vmem:[#allocation2 + $0x18] sm:$0xff]
      %vm286 = vcmask 130048
      %v287 = vsel %vm286, %v172, 0.0
      %v288 = vsel %vm286, %v200, 0.0
      %v289 = vadd.f32 %v287, %v288
      %v290 = vsel %vm286, %v228, 0.0
      %v291 = vadd.f32 %v289, %v290
      %v292 = vsel %vm286, %v256, 0.0
      %v293 = vadd.f32 %v291, %v292
      %v294 = vsel %vm286, %v179, 0.0
      %v295 = vsel %vm286, %v207, 0.0
      %v296 = vadd.f32 %v294, %v295
      %v297 = vsel %vm286, %v235, 0.0
      %v298 = vadd.f32 %v296, %v297
      %v299 = vsel %vm286, %v263, 0.0
      %v300 = vadd.f32 %v298, %v299
      %v301 = vsel %vm286, %v186, 0.0
      %v302 = vsel %vm286, %v214, 0.0
      %v303 = vadd.f32 %v301, %v302
      %v304 = vsel %vm286, %v242, 0.0
      %v305 = vadd.f32 %v303, %v304
      %v306 = vsel %vm286, %v270, 0.0
      %v307 = vadd.f32 %v305, %v306
      %v308 = vsel %vm286, %v193, 0.0
      %v309 = vsel %vm286, %v221, 0.0
      %v310 = vadd.f32 %v308, %v309
      %v311 = vsel %vm286, %v249, 0.0
      %v312 = vadd.f32 %v310, %v311
      %v313 = vsel %vm286, %v277, 0.0
      %v314 = vadd.f32 %v312, %v313
      %v315 = vadd.f32 %v282, %v293
      %v316 = vadd.f32 %v283, %v300
      %v317 = vadd.f32 %v284, %v307
      %v318 = vadd.f32 %v285, %v314
      %319 = vst.msk [vmem:[#allocation2] sm:$0xff] %vm286, %v315
      %320 = vst.msk [vmem:[#allocation2 + $0x8] sm:$0xff] %vm286, %v316
      %321 = vst.msk [vmem:[#allocation2 + $0x10] sm:$0xff] %vm286, %v317
      %322 = vst.msk [vmem:[#allocation2 + $0x18] sm:$0xff] %vm286, %v318
    $region17: #{tpu_custom_call.1} parent=1 // pred_fallthru
      _
    // Predicated region
    $region18: #{tpu_custom_call.1} parent=1 // pred_check
      %p323 = pneg %p76
    $region19: #{tpu_custom_call.1} parent=1 // pred_check_branch
      %325 = sbr.rel (%p323) target = $region21
    $region20: #{tpu_custom_call.1} parent=1 // pred_region
      %v326 = vld [vmem:[#allocation2] sm:$0xff]
      %v327 = vld [vmem:[#allocation2 + $0x8] sm:$0xff]
      %v328 = vld [vmem:[#allocation2 + $0x10] sm:$0xff]
      %v329 = vld [vmem:[#allocation2 + $0x18] sm:$0xff]
      %vm330 = vcmask 130048
      %v331 = vsel %vm330, %v326, 0.0
      %v332 = vsel %vm330, %v327, 0.0
      %v333 = vadd.f32 %v331, %v332
      %v334 = vsel %vm330, %v328, 0.0
      %v335 = vadd.f32 %v333, %v334
      %v336 = vsel %vm330, %v329, 0.0
      %v337 = vadd.f32 %v335, %v336
      %338 = vadd.xlane.f32.xlu0 %v337
      %v339 = vpop.xlane.xlu0 %338
      %v340 = vrot.slane %v339, 4
      %v341 = vadd.f32 %v339, %v340
      %v342 = vrot.slane %v341, 2
      %v343 = vadd.f32 %v341, %v342
      %v344 = vrot.slane %v343, 1
      %v345 = vadd.f32 %v343, %v344
      %s346 = vtos %v345
      %s347 = scalar_lea.smem [#allocation3], 0
      %348 = sst [smem:[%s347]] %s346
    $region21: #{tpu_custom_call.1} parent=1 // pred_fallthru
      _
    // Predicated region
    $region22: #{tpu_custom_call.1} parent=1 // pred_check
      _
    $region23: #{tpu_custom_call.1} parent=1 // pred_check_branch
      %350 = sbr.rel (0) target = $region25
    $region24: #{tpu_custom_call.1} parent=1 // pred_region
      %s352 = ssub.s32 16, 16
      %353 = vsyncadd [#allocation4], %s352
      %356 = dma.smem_to_hbm [#allocation3], 16, %s2, [#allocation4]
    $region25: #{tpu_custom_call.1} parent=1 // pred_fallthru
      _
    // Predicated region
    $region26: #{tpu_custom_call.1} parent=1 // pred_check
      _
    $region27: #{tpu_custom_call.1} parent=1 // pred_check_branch
      %358 = sbr.rel (0) target = $region29
    $region28: #{tpu_custom_call.1} parent=1 // pred_region
      %359 = dma.done [#allocation4], 16
    $region29: #{tpu_custom_call.1} parent=1 // pred_fallthru
      _
    %360 = sfence
    %361 = vsyncpa [#allocation4], 1

</llo_original>
